<compile_context>
chip_gen: v7x
topology: tpu7x:2x2x1
jax: 0.10.0
libtpu: 0.0.40
codegen_flags: <defaults>
</compile_context>

<pallas_src>
import functools
import math

import jax
import jax.numpy as jnp
from jax.experimental import pallas as pl
from jax.experimental.pallas import tpu as pltpu


def _round_up(x, m):
    return ((x + m - 1) // m) * m


def _logreg_kernel(x_ref, wc_ref, bc_ref, out_ref, *, mm_dtype):
    # Single fused affine map on the MXU (f32 accumulation).
    x = x_ref[...].astype(mm_dtype)
    logits = jnp.dot(x, wc_ref[...], preferred_element_type=jnp.float32)
    logits = logits + bc_ref[...]

    # Numerically stable log-softmax along the (lane) class dimension.
    m = jnp.max(logits, axis=-1, keepdims=True)
    shifted = logits - m
    lse = jnp.log(jnp.sum(jnp.exp(shifted), axis=-1, keepdims=True))
    out_ref[...] = (shifted - lse).astype(out_ref.dtype)


def _choose_tile(n, tile_n, ft_in, nb_classes):
    """Batch tile: large (amortize per-step overhead), VMEM-safe on v5e,
    evenly split (no 2x tail waste), and >= 2 steps on big batches (v7x megacore)."""
    # Double-buffered x (f32) + out (f32) blocks must fit v5e's 16 MiB scoped
    # VMEM default; target ~12 MiB to leave headroom for weights/bias/scratch.
    bytes_per_row = 4 * (ft_in + nb_classes)
    vmem_cap_rows = max(8, ((12 * 1024 * 1024) // (2 * bytes_per_row)) // 8 * 8)
    tile_cap = max(8, min(_round_up(tile_n, 8), vmem_cap_rows))

    num_steps = pl.cdiv(n, tile_cap)
    if n >= 1024:
        num_steps = max(num_steps, 2)   # keep both v7x TensorCores busy
    tile = min(_round_up(pl.cdiv(n, num_steps), 8), tile_cap)
    num_steps = pl.cdiv(n, tile)
    return tile, num_steps


@functools.partial(jax.jit, static_argnames=("tile_n", "use_bf16"))
def logreg_forward(x, w1, b1, w2, b2, w3, b3, *, tile_n=2048, use_bf16=True):
    """x: (N, ft_in); w1/w2: (ft_in, ft_in); w3: (ft_in, nb_classes); biases (1, dim).

    Weights are stored pre-transposed as (in_features, out_features), so each
    layer is x @ W + b (== PyTorch's x @ W.T + b for its (out, in) layout).
    """
    n, ft_in = x.shape
    nb_classes = w3.shape[1]
    mm_dtype = jnp.bfloat16 if use_bf16 else jnp.float32

    # --- collapse the activation-free Linear chain (exact; done once in XLA) ---
    wc = ((w1 @ w2) @ w3).astype(mm_dtype)      # (ft_in, nb_classes)
    bc = (b1 @ w2 + b2) @ w3 + b3               # (1, nb_classes), f32

    tile, num_steps = _choose_tile(n, tile_n, ft_in, nb_classes)
    n_pad = num_steps * tile

    # Row-pad only (zero rows are harmless and sliced off below); x keeps its
    # native f32 lane layout — no wrapper-side pad/cast pass over the features.
    x_in = x if n_pad == n else jnp.zeros((n_pad, ft_in), x.dtype).at[:n].set(x)

    out = pl.pallas_call(
        functools.partial(_logreg_kernel, mm_dtype=mm_dtype),
        out_shape=jax.ShapeDtypeStruct((n_pad, nb_classes), jnp.float32),
        grid=(num_steps,),
        in_specs=[
            # Activations: tiled over N, full (unpadded) feature width.
            pl.BlockSpec((tile, ft_in), lambda i: (i, 0)),
            # Fused weight & bias: tiny, VMEM-resident across the whole grid.
            pl.BlockSpec((ft_in, nb_classes), lambda i: (0, 0)),
            pl.BlockSpec((1, nb_classes), lambda i: (0, 0)),
        ],
        out_specs=pl.BlockSpec((tile, nb_classes), lambda i: (i, 0)),
        compiler_params=pltpu.CompilerParams(
            dimension_semantics=("parallel",),
        ),
    )(x_in, wc, bc)

    return out if n_pad == n else out[:n]


def xavier_uniform(key, fan_in, fan_out):
    # matches torch.nn.init.xavier_uniform_ for a Linear weight of shape
    # (out, in); built directly in the transposed (in, out) layout used here.
    bound = math.sqrt(6.0 / (fan_in + fan_out))
    return jax.random.uniform(
        key, (fan_in, fan_out), minval=-bound, maxval=bound, dtype=jnp.float32)


if __name__ == "__main__":
    ft_in = 32
    nb_classes = 16
    batch = 8

    root = jax.random.PRNGKey(0)
    k_x, k_w1, k_w2, k_w3 = jax.random.split(root, 4)

    x = jax.random.normal(k_x, (batch, ft_in), dtype=jnp.float32)

    # deterministic xavier-uniform weights, zero biases (as in LogReg.weights_init)
    w1 = xavier_uniform(k_w1, ft_in, ft_in)
    b1 = jnp.zeros((1, ft_in), dtype=jnp.float32)
    w2 = xavier_uniform(k_w2, ft_in, ft_in)
    b2 = jnp.zeros((1, ft_in), dtype=jnp.float32)
    w3 = xavier_uniform(k_w3, ft_in, nb_classes)
    b3 = jnp.zeros((1, nb_classes), dtype=jnp.float32)

    out = logreg_forward(x, w1, b1, w2, b2, w3, b3)
    jax.block_until_ready(out)
    assert out.shape == (batch, nb_classes)

    # Reference 1: same fused math with bf16 matmul operands in plain JAX
    # (tight tolerance; validates the kernel itself).
    wc = (w1 @ w2) @ w3
    bc = (b1 @ w2 + b2) @ w3 + b3
    logits_bf16 = jnp.dot(
        x.astype(jnp.bfloat16), wc.astype(jnp.bfloat16),
        preferred_element_type=jnp.float32) + bc
    ref_bf16 = jax.nn.log_softmax(logits_bf16, axis=-1)
    assert jnp.allclose(out, ref_bf16, atol=1e-4, rtol=1e-4), \
        "mismatch vs fused-bf16 JAX reference"

    # Reference 2: exact f32 chained formula of the original module
    # (looser tolerance because the kernel uses bf16 matmul operands).
    ref_f32 = jax.nn.log_softmax(((x @ w1 + b1) @ w2 + b2) @ w3 + b3, axis=-1)
    assert jnp.allclose(out, ref_f32, atol=5e-2, rtol=5e-2), \
        "mismatch vs f32 chained reference"

    print("KERNEL_OK")
</pallas_src>

<mosaic_0001>
module attributes {stable_mosaic.version = 11 : i64} {
  func.func @_logreg_kernel(%arg0: i32, %arg1: memref<8x32xf32, #tpu.memory_space<vmem>>, %arg2: memref<32x16xbf16, #tpu.memory_space<vmem>>, %arg3: memref<1x16xf32, #tpu.memory_space<vmem>>, %arg4: memref<8x16xf32, #tpu.memory_space<vmem>>) attributes {dimension_semantics = [#tpu.dimension_semantics<parallel>], iteration_bounds = array<i64: 1>, scalar_prefetch = 0 : i64, scratch_operands = 0 : i64, tpu.core_type = #tpu.core_type<tc>, window_params = [{transform_indices = @transform_0, window_bounds = array<i64: 8, 32>}, {pipeline_mode = #tpu.pipeline_mode<synchronous>, transform_indices = @transform_1, window_bounds = array<i64: 32, 16>}, {pipeline_mode = #tpu.pipeline_mode<synchronous>, transform_indices = @transform_2, window_bounds = array<i64: 1, 16>}, {transform_indices = @transform_3, window_bounds = array<i64: 8, 16>}]} {
    %c0 = arith.constant 0 : index
    %c0_0 = arith.constant 0 : index
    %0 = vector.load %arg1[%c0, %c0_0] : memref<8x32xf32, #tpu.memory_space<vmem>>, vector<8x32xf32>
    %1 = arith.truncf %0 : vector<8x32xf32> to vector<8x32xbf16>
    %c0_1 = arith.constant 0 : index
    %c0_2 = arith.constant 0 : index
    %2 = vector.load %arg2[%c0_1, %c0_2] : memref<32x16xbf16, #tpu.memory_space<vmem>>, vector<32x16xbf16>
    %cst = arith.constant dense<0.000000e+00> : vector<8x16xf32>
    %3 = tpu.matmul %1, %2, %cst {dimension_numbers = #tpu.dot_dimension_numbers<[1], [0], [0], [1], [0, 0, 1, 1], [], []>} : vector<8x32xbf16>, vector<32x16xbf16>, vector<8x16xf32> -> vector<8x16xf32>
    %c0_3 = arith.constant 0 : index
    %c0_4 = arith.constant 0 : index
    %4 = vector.load %arg3[%c0_3, %c0_4] : memref<1x16xf32, #tpu.memory_space<vmem>>, vector<1x16xf32>
    %5 = vector.broadcast %4 : vector<1x16xf32> to vector<8x16xf32>
    %6 = arith.addf %3, %5 : vector<8x16xf32>
    %cst_5 = arith.constant dense<0xFF800000> : vector<8xf32>
    %7 = vector.multi_reduction <maximumf>, %6, %cst_5 [1] : vector<8x16xf32> to vector<8xf32>
    %8 = vector.shape_cast %7 : vector<8xf32> to vector<8x1xf32>
    %9 = vector.broadcast %8 : vector<8x1xf32> to vector<8x16xf32>
    %10 = arith.subf %6, %9 : vector<8x16xf32>
    %11 = math.exp %10 : vector<8x16xf32>
    %cst_6 = arith.constant dense<0.000000e+00> : vector<8xf32>
    %12 = vector.multi_reduction <add>, %11, %cst_6 [1] : vector<8x16xf32> to vector<8xf32>
    %13 = vector.shape_cast %12 : vector<8xf32> to vector<8x1xf32>
    %14 = math.log %13 : vector<8x1xf32>
    %15 = vector.broadcast %14 : vector<8x1xf32> to vector<8x16xf32>
    %16 = arith.subf %10, %15 : vector<8x16xf32>
    %c0_7 = arith.constant 0 : index
    %c0_8 = arith.constant 0 : index
    %17 = vector.load %arg4[%c0_7, %c0_8] : memref<8x16xf32, #tpu.memory_space<vmem>>, vector<8x16xf32>
    tpu.vector_store %arg4[%c0_7, %c0_8], %16 {strides = array<i32>} : memref<8x16xf32, #tpu.memory_space<vmem>>, vector<8x16xf32>,
    return
  }
  func.func @transform_0(%arg0: i32) -> (i32, i32) {
    %c0_i32 = arith.constant 0 : i32
    %c0_i32_0 = arith.constant 0 : i32
    return %arg0, %c0_i32 : i32, i32
  }
  func.func @transform_1(%arg0: i32) -> (i32, i32) {
    %c0_i32 = arith.constant 0 : i32
    %c0_i32_0 = arith.constant 0 : i32
    %c0_i32_1 = arith.constant 0 : i32
    return %c0_i32, %c0_i32_0 : i32, i32
  }
  func.func @transform_2(%arg0: i32) -> (i32, i32) {
    %c0_i32 = arith.constant 0 : i32
    %c0_i32_0 = arith.constant 0 : i32
    %c0_i32_1 = arith.constant 0 : i32
    return %c0_i32, %c0_i32_0 : i32, i32
  }
  func.func @transform_3(%arg0: i32) -> (i32, i32) {
    %c0_i32 = arith.constant 0 : i32
    %c0_i32_0 = arith.constant 0 : i32
    return %arg0, %c0_i32 : i32, i32
  }
}

</mosaic_0001>

<llo_original>
// kernel: logreg_forward.1
$region0: #{logreg_forward.1}
  #allocation0 [shape = 'u32[]', space=smem, size = 0x4, offset = 0x4, fixed_abs, tag = 'smem constant byte address 0x4 - core index']
  #allocation1 [shape = 'u32[144,128]{1,0:T(1,128)}', space=vmem, size = 0x12000, scoped, tag = 'internal scratch']
  %s0 = inlined_call_operand.vmem [shape: f32[8,32], index: 0, kind: input, shape index: {}]
  %s1 = inlined_call_operand.vmem [shape: bf16[32,16], index: 1, kind: input, shape index: {}]
  %s2 = inlined_call_operand.vmem [shape: f32[1,16], index: 2, kind: input, shape index: {}]
  %s3 = inlined_call_operand.hbm [shape: f32[8,16], index: 3, kind: output, shape index: {}]
  %s4 = sld [smem:[#allocation0]]
  $region22: #{logreg_forward.1} parent=0
    _
  %s6 = ssub.s32 1, %s4
  %s7 = scalar_select 0, %s6, %s4
  $region1: #{logreg_forward.1} parent=0
    #allocation2 [shape = 'u8[4096]{0}', space=vmem, size = 0x1000, scoped, tag = 'output window, operand 0, single buffered']
    #allocation3 [shape = 's32[1]{0}', space=sflag, size = 0x4, scoped, tag = 'scoped memory for logreg_forward.1']
    %8 = vsyncpa [#allocation3], 0
    // Predicated region
    $region2: #{logreg_forward.1} parent=1 // pred_check
      _
    $region3: #{logreg_forward.1} parent=1 // pred_check_branch
      %10 = sbr.rel (0) target = $region5
    $region4: #{logreg_forward.1} parent=1 // pred_region
      _
    $region5: #{logreg_forward.1} parent=1 // pred_fallthru
      _
    // Predicated region
    $region6: #{logreg_forward.1} parent=1 // pred_check
      _
    $region7: #{logreg_forward.1} parent=1 // pred_check_branch
      %12 = sbr.rel (0) target = $region9
    $region8: #{logreg_forward.1} parent=1 // pred_region
      _
    $region9: #{logreg_forward.1} parent=1 // pred_fallthru
      _
    // Predicated region
    $region10: #{logreg_forward.1} parent=1 // pred_check
      _
    $region11: #{logreg_forward.1} parent=1 // pred_check_branch
      %14 = sbr.rel (0) target = $region13
    $region12: #{logreg_forward.1} parent=1 // pred_region
      _
    $region13: #{logreg_forward.1} parent=1 // pred_fallthru
      _
    %v16 = vld [vmem:[%s0] sm:$0xff]
    %v17 = vpack.c.bf16 %v16, %v16
    %v18 = vld [vmem:[%s1] sm:$0xf]
    %v19 = vld [vmem:[%s1 + $0x4] sm:$0xf]
    %v20 = vld [vmem:[%s1 + $0x8] sm:$0xf]
    %v21 = vld [vmem:[%s1 + $0xc] sm:$0xf]
    %v22 = vld [vmem:[%s2] sm:$0x1]
    %v24 = vlaneseq
    %v25 = vshrl.u32 %v24, 7
    %v26 = vsub.s32 0, %v25
    %v27 = vrot.slane %v22, %v26
    %v33 = vunpack.c.l.b16 %v18
    %v34 = vunpack.c.l.b16 %v19
    %v35 = vunpack.c.l.b16 %v20
    %v36 = vunpack.c.l.b16 %v21
    %v37 = vpack.c.b16 %v34, %v33
    %v38 = vpack.c.b16 %v36, %v35
    %vm41 = vcmask 261120
    %v43 = vsel %vm41, %v17, 0
    %45 = vmatprep.subr.bf16.mxu0 0
    %46 = vmatpush1.bf16.msra.mxu0 %v37
    %47 = vmatprep.subr.bf16.mxu0 0
    %48 = vmatpush1.bf16.msra.mxu0 %v38
    %49 = vmatprep.subr.bf16.mxu0 0
    %50 = vmatpush1.bf16.msra.mxu0 0
    %51 = vmatprep.subr.bf16.mxu0 0
    %52 = vmatpush1.bf16.msra.mxu0 0
    %53 = vmatprep.subr.bf16.mxu0 0
    %54 = vmatpush1.bf16.msra.mxu0 0
    %55 = vmatprep.subr.bf16.mxu0 0
    %56 = vmatpush1.bf16.msra.mxu0 0
    %57 = vmatprep.subr.bf16.mxu0 0
    %58 = vmatpush1.bf16.msra.mxu0 0
    %59 = vmatprep.subr.bf16.mxu0 0
    %60 = vmatpush1.bf16.msra.mxu0 0
    %61 = vmatprep.subr.bf16.mxu0 0
    %62 = vmatpush1.bf16.msra.mxu0 0
    %63 = vmatprep.subr.bf16.mxu0 0
    %64 = vmatpush1.bf16.msra.mxu0 0
    %65 = vmatprep.subr.bf16.mxu0 0
    %66 = vmatpush1.bf16.msra.mxu0 0
    %67 = vmatprep.subr.bf16.mxu0 0
    %68 = vmatpush1.bf16.msra.mxu0 0
    %69 = vmatprep.subr.bf16.mxu0 0
    %70 = vmatpush1.bf16.msra.mxu0 0
    %71 = vmatprep.subr.bf16.mxu0 0
    %72 = vmatpush1.bf16.msra.mxu0 0
    %73 = vmatprep.subr.bf16.mxu0 0
    %74 = vmatpush1.bf16.msra.mxu0 0
    %75 = vmatprep.subr.bf16.mxu0 0
    %76 = vmatpush1.bf16.msra.mxu0 0
    %77 = vmatprep.mubr.bf16.mxu0 0
    %78 = vmatmul.mubr.bf16.gmra.mrb[0].mxu0 %v43
    %v79 = vpop.f32.mrb[0].mxu0
    %v80 = vadd.f32 %v27, %v79
    %v81 = vpop.f32.mrb[0].mxu0
    %v82 = vpop.f32.mrb[0].mxu0
    %v83 = vpop.f32.mrb[0].mxu0
    %84 = vdwg.mxu0
    %vm85 = vcmask 130048
    %v86 = vsel %vm85, %v80, -inf
    %87 = vmax.xlane.f32.xlu0 %v86
    %v88 = vpop.xlane.xlu0 %87
    %v89 = vsub.f32 %v80, %v88
    %v90 = vmul.f32 %v89, 1.442695
    %v91 = vpow.pop %v90
    %v92 = vsel %vm85, %v91, 0.0
    %93 = vadd.xlane.f32.xlu0 %v92
    %v94 = vpop.xlane.xlu0 %93
    %v95 = vlog2.pop %v94
    %v96 = vmul.f32 %v95, 0.6931472
    %v97 = vsub.f32 %v89, %v96
    %98 = vst.msk [vmem:[#allocation2] sm:$0xff] %vm85, %v97
    // Predicated region
    $region14: #{logreg_forward.1} parent=1 // pred_check
      _
    $region15: #{logreg_forward.1} parent=1 // pred_check_branch
      %100 = sbr.rel (0) target = $region17
    $region16: #{logreg_forward.1} parent=1 // pred_region
      %s102 = ssub.s32 128, 128
      %103 = vsyncadd [#allocation3], %s102
      %s105 = sshll.u32 [#allocation2], 4
      %s106 = int_to_ptr.vmem [resolvable:$true] %s105
      %108 = dma.vmem_to_hbm [thread:$0]  %s106, 128, %s3, [#allocation3]
    $region17: #{logreg_forward.1} parent=1 // pred_fallthru
      _
    // Predicated region
    $region18: #{logreg_forward.1} parent=1 // pred_check
      _
    $region19: #{logreg_forward.1} parent=1 // pred_check_branch
      %110 = sbr.rel (0) target = $region21
    $region20: #{logreg_forward.1} parent=1 // pred_region
      %111 = dma.done [#allocation3], 128
    $region21: #{logreg_forward.1} parent=1 // pred_fallthru
      _
    %112 = vsyncpa [#allocation3], 1

</llo_original>
